<compile_context>
chip_gen: v7x
topology: tpu7x:2x2x1
jax: 0.10.0
libtpu: 0.0.40
codegen_flags: <defaults>
</compile_context>

<pallas_src>
import jax
import jax.numpy as jnp
from jax.experimental import pallas as pl
from jax.experimental.pallas import tpu as pltpu

# ---- module hyper-parameters (mirrors Quanv2d.__init__ defaults) -----------
IN_CHANNELS = 4
OUT_CHANNELS = 8
KERNEL_SIZE = 2
STRIDE = 1
PADDING = 0
NUM_QLAYERS = 2
CK2 = IN_CHANNELS * KERNEL_SIZE * KERNEL_SIZE      # qubits / unfold feature dim

# Tiling caps (VMEM-budget derived; safe on v5e/v6e/v7x):
#   x + out per image per tile: (C+OC)*TW*4 B; tables: 2*C*TW*4 B;
#   with TW<=16384, BT<=8 the double-buffered footprint is <= ~13 MiB.
_MAX_TW = 16384          # lanes per spatial tile
_MAX_BT = 8              # images per grid step (unrolled inside the kernel)


# ------------------- JAX glue: unfold / fold (tiny precompute only) ----------
def unfold(x, k, stride, padding):
    """F.unfold: NCHW -> (B, C*k*k, L), PyTorch ordering c*k*k + i*k + j."""
    if padding:
        x = jnp.pad(x, ((0, 0), (0, 0), (padding,) * 2, (padding,) * 2))
    B, C, H, W = x.shape
    Ho = (H - k) // stride + 1
    Wo = (W - k) // stride + 1
    cols = []
    for i in range(k):
        for j in range(k):
            cols.append(x[:, :, i:i + stride * Ho:stride, j:j + stride * Wo:stride])
    patches = jnp.stack(cols, axis=2)               # (B, C, k*k, Ho, Wo)
    return patches.reshape(B, C * k * k, Ho * Wo)


def fold(patches, out_size, k, stride, padding):
    """F.fold: (B, C*k*k, L) -> NCHW overlap-add."""
    B, ckk, L = patches.shape
    C = ckk // (k * k)
    H, W = out_size
    Hp, Wp = H + 2 * padding, W + 2 * padding
    Ho = (Hp - k) // stride + 1
    Wo = (Wp - k) // stride + 1
    p = patches.reshape(B, C, k, k, Ho, Wo)
    out = jnp.zeros((B, C, Hp, Wp), patches.dtype)
    for i in range(k):
        for j in range(k):
            out = out.at[:, :, i:i + stride * Ho:stride,
                               j:j + stride * Wo:stride].add(p[:, :, i, j])
    if padding:
        out = out[:, :, padding:padding + H, padding:padding + W]
    return out


# ---------------------------- fused Pallas kernel ----------------------------
def _fused_quanv_kernel(x_ref, r_ref, phi_ref, w_ref, bias_ref, o_ref):
    # x_ref:    (Bt, C, TW)   input pixels (lane-dense spatial tile)
    # r_ref:    (C, TW)       R   = hypot(fold(cos th), fold(sin th)) / counts
    # phi_ref:  (C, TW)       PHI = atan2(fold(sin th), fold(cos th))
    # w_ref:    (OC, C)       1x1 conv weight
    # bias_ref: (OC, 1)       1x1 conv bias
    # o_ref:    (Bt, OC, TW)  output tile (lane-dense)
    r = r_ref[...]
    phi = phi_ref[...]
    w = w_ref[...]
    bias = bias_ref[...]
    bt = x_ref.shape[0]
    for b in range(bt):                              # static unroll, Bt <= 8
        # quantum surrogate + fold overlap-add + normalisation, one EUP cos
        norm = r * jnp.cos(x_ref[b] + phi)           # (C, TW)
        # classical 1x1 conv: (OC, C) @ (C, TW) on the MXU
        o_ref[b] = (jnp.dot(w, norm, preferred_element_type=jnp.float32)
                    + bias).astype(o_ref.dtype)


def _pick_tiles(B, HW_pad):
    """Pick (TW, BT). HW_pad is a multiple of 128 (wrapper guarantees it)."""
    tw = min(HW_pad, _MAX_TW)
    tw -= tw % 128
    while HW_pad % tw:
        tw -= 128
    bt = min(B, _MAX_BT)
    while B % bt:
        bt -= 1
    # keep >= 2 grid steps along a parallel axis so v7x's 2nd TC is used
    if (HW_pad // tw) * (B // bt) < 2:
        if B > 1:
            bt = max(1, B // 2)
            while B % bt:
                bt -= 1
        elif HW_pad // 128 >= 2:
            half = (tw // 2) - (tw // 2) % 128
            while half >= 128 and HW_pad % half:
                half -= 128
            if half >= 128:
                tw = half
    return tw, bt


def _fused_quanv_call(x3d, r_tab, phi_tab, w2d, bias2d, out_dtype=jnp.float32):
    B, C, HWp = x3d.shape
    OC = w2d.shape[0]
    TW, BT = _pick_tiles(B, HWp)
    # batch innermost: R/PHI/W/bias block indices are constant across it, so
    # they stay VMEM-resident (no per-step re-DMA of the tables).
    grid = (HWp // TW, B // BT)
    return pl.pallas_call(
        _fused_quanv_kernel,
        out_shape=jax.ShapeDtypeStruct((B, OC, HWp), out_dtype),
        grid=grid,
        in_specs=[
            pl.BlockSpec((BT, C, TW), lambda j, b: (b, 0, j)),
            pl.BlockSpec((C, TW), lambda j, b: (0, j)),
            pl.BlockSpec((C, TW), lambda j, b: (0, j)),
            pl.BlockSpec((OC, C), lambda j, b: (0, 0)),
            pl.BlockSpec((OC, 1), lambda j, b: (0, 0)),
        ],
        out_specs=pl.BlockSpec((BT, OC, TW), lambda j, b: (b, 0, j)),
        compiler_params=pltpu.CompilerParams(
            dimension_semantics=("parallel", "parallel"),
            vmem_limit_bytes=32 * 1024 * 1024,
        ),
    )(x3d, r_tab, phi_tab, w2d, bias2d)


# ---------------------------- forward ----------------------------------------
def quanv2d_forward(x, q_weights, conv_w, conv_b, out_dtype=jnp.float32):
    assert x.ndim == 4, "Input tensor must have 4 dimensions (B, C, H, W)"
    assert x.dtype == jnp.float32, "Input tensor must be float32"
    assert x.shape[1] == IN_CHANNELS
    B, C, H, W = x.shape
    k, s, p = KERNEL_SIZE, STRIDE, PADDING

    if p != 0:   # module quirk: explicit pad AND padding passed to un/fold again
        x = jnp.pad(x, ((0, 0), (0, 0), (p, p), (p, p)))
        H += 2 * p
        W += 2 * p

    # --- tiny batch-independent tables (C, H*W); computed once per call -------
    theta = jnp.sum(q_weights, axis=0).astype(jnp.float32)       # (C*k*k,)
    ones = jnp.ones((1, C, H, W), jnp.float32)
    unfolded_ones = unfold(ones, k, s, p)                        # (1, C*k*k, L)
    counts = fold(unfolded_ones, (H, W), k, s, p)                # (1, C, H, W)
    L = unfolded_ones.shape[-1]
    cos_t = jnp.broadcast_to(jnp.cos(theta)[None, :, None], (1, CK2, L))
    sin_t = jnp.broadcast_to(jnp.sin(theta)[None, :, None], (1, CK2, L))
    a_tab = (fold(cos_t, (H, W), k, s, p) / counts)[0].reshape(C, H * W)
    s_tab = (fold(sin_t, (H, W), k, s, p) / counts)[0].reshape(C, H * W)
    # amplitude-phase form (exact identity): a*cos(x) - b*sin(x) = R*cos(x+PHI)
    r_tab = jnp.hypot(a_tab, s_tab)
    phi_tab = jnp.arctan2(s_tab, a_tab)

    # --- lane-dense layouts; NCHW reshapes are free (no transposes) -----------
    HW = H * W
    HWp = ((HW + 127) // 128) * 128      # pad flattened spatial axis to x128
    x3d = x.reshape(B, C, HW)
    if HWp != HW:
        pad = HWp - HW
        x3d = jnp.pad(x3d, ((0, 0), (0, 0), (0, pad)))
        r_tab = jnp.pad(r_tab, ((0, 0), (0, pad)))      # R=0 -> pad lanes inert
        phi_tab = jnp.pad(phi_tab, ((0, 0), (0, pad)))
    w2d = conv_w.reshape(OUT_CHANNELS, IN_CHANNELS).astype(jnp.float32)
    bias2d = conv_b.reshape(OUT_CHANNELS, 1).astype(jnp.float32)

    out3d = _fused_quanv_call(x3d, r_tab, phi_tab, w2d, bias2d, out_dtype)
    return out3d[:, :, :HW].reshape(B, OUT_CHANNELS, H, W)


# ------------------- pure-JAX reference (same surrogate semantics) -----------
def quanv2d_reference(x, q_weights, conv_w, conv_b):
    B, C, H, W = x.shape
    k, s, p = KERNEL_SIZE, STRIDE, PADDING
    if p != 0:
        x = jnp.pad(x, ((0, 0), (0, 0), (p, p), (p, p)))
        H += 2 * p
        W += 2 * p
    theta = jnp.sum(q_weights, axis=0)
    patches = unfold(x, k, s, p)                                 # (B, C*k*k, L)
    q_out = jnp.cos(patches + theta[None, :, None])
    folded = fold(q_out, (H, W), k, s, p)
    cnt = fold(unfold(jnp.ones_like(x), k, s, p), (H, W), k, s, p)
    qc = folded / cnt
    w2d = conv_w.reshape(OUT_CHANNELS, IN_CHANNELS)
    return jnp.einsum('oc,bchw->bohw', w2d, qc) + conv_b[None, :, None, None]


# ---------------------------- main -------------------------------------------
if __name__ == "__main__":
    key = jax.random.PRNGKey(0)
    kx, kq, kw, kb = jax.random.split(key, 4)

    B, H, W = 2, 16, 16
    x = jax.random.normal(kx, (B, IN_CHANNELS, H, W), dtype=jnp.float32)

    # Deterministic synthetic parameters (shapes from the module __init__):
    #   qlayer weights: (num_qlayers, num_qubits) = (2, C*k*k)
    #   classical_conv: Conv2d(C, OC, 1) -> weight (OC, C, 1, 1), bias (OC,)
    q_weights = jax.random.uniform(kq, (NUM_QLAYERS, CK2),
                                   minval=0.0, maxval=2.0 * jnp.pi,
                                   dtype=jnp.float32)
    bound = 1.0 / jnp.sqrt(IN_CHANNELS)
    conv_w = jax.random.uniform(kw, (OUT_CHANNELS, IN_CHANNELS, 1, 1),
                                minval=-bound, maxval=bound, dtype=jnp.float32)
    conv_b = jax.random.uniform(kb, (OUT_CHANNELS,),
                                minval=-bound, maxval=bound, dtype=jnp.float32)

    out = quanv2d_forward(x, q_weights, conv_w, conv_b)
    out = jax.block_until_ready(out)
    assert out.shape == (B, OUT_CHANNELS, H, W), out.shape
    assert out.dtype == jnp.float32

    ref = jax.block_until_ready(quanv2d_reference(x, q_weights, conv_w, conv_b))
    max_err = float(jnp.max(jnp.abs(out - ref)))
    assert max_err < 1e-3, f"max abs error vs reference: {max_err}"

    print("KERNEL_OK")
</pallas_src>

<mosaic_0001>
module attributes {stable_mosaic.version = 11 : i64} {
  func.func @_fused_quanv_kernel(%arg0: i32, %arg1: i32, %arg2: memref<1x4x256xf32, #tpu.memory_space<vmem>>, %arg3: memref<4x256xf32, #tpu.memory_space<vmem>>, %arg4: memref<4x256xf32, #tpu.memory_space<vmem>>, %arg5: memref<8x4xf32, #tpu.memory_space<vmem>>, %arg6: memref<8x1xf32, #tpu.memory_space<vmem>>, %arg7: memref<1x8x256xf32, #tpu.memory_space<vmem>>) attributes {dimension_semantics = [#tpu.dimension_semantics<parallel>, #tpu.dimension_semantics<parallel>], iteration_bounds = array<i64: 1, 2>, scalar_prefetch = 0 : i64, scratch_operands = 0 : i64, tpu.core_type = #tpu.core_type<tc>, window_params = [{transform_indices = @transform_0, window_bounds = array<i64: 1, 4, 256>}, {transform_indices = @transform_1, window_bounds = array<i64: 4, 256>}, {transform_indices = @transform_2, window_bounds = array<i64: 4, 256>}, {pipeline_mode = #tpu.pipeline_mode<synchronous>, transform_indices = @transform_3, window_bounds = array<i64: 8, 4>}, {pipeline_mode = #tpu.pipeline_mode<synchronous>, transform_indices = @transform_4, window_bounds = array<i64: 8, 1>}, {transform_indices = @transform_5, window_bounds = array<i64: 1, 8, 256>}]} {
    %c0 = arith.constant 0 : index
    %c0_0 = arith.constant 0 : index
    %0 = vector.load %arg3[%c0, %c0_0] : memref<4x256xf32, #tpu.memory_space<vmem>>, vector<4x256xf32>
    %c0_1 = arith.constant 0 : index
    %c0_2 = arith.constant 0 : index
    %1 = vector.load %arg4[%c0_1, %c0_2] : memref<4x256xf32, #tpu.memory_space<vmem>>, vector<4x256xf32>
    %c0_3 = arith.constant 0 : index
    %c0_4 = arith.constant 0 : index
    %2 = vector.load %arg5[%c0_3, %c0_4] : memref<8x4xf32, #tpu.memory_space<vmem>>, vector<8x4xf32>
    %c0_5 = arith.constant 0 : index
    %c0_6 = arith.constant 0 : index
    %3 = vector.load %arg6[%c0_5, %c0_6] : memref<8x1xf32, #tpu.memory_space<vmem>>, vector<8x1xf32>
    %c0_7 = arith.constant 0 : index
    %c0_8 = arith.constant 0 : index
    %c0_9 = arith.constant 0 : index
    %4 = vector.load %arg2[%c0_7, %c0_8, %c0_9] : memref<1x4x256xf32, #tpu.memory_space<vmem>>, vector<1x4x256xf32>
    %5 = vector.shape_cast %4 : vector<1x4x256xf32> to vector<4x256xf32>
    %6 = arith.addf %5, %1 : vector<4x256xf32>
    %7 = math.cos %6 : vector<4x256xf32>
    %8 = arith.mulf %0, %7 : vector<4x256xf32>
    %cst = arith.constant dense<0.000000e+00> : vector<8x256xf32>
    %9 = tpu.matmul %2, %8, %cst {dimension_numbers = #tpu.dot_dimension_numbers<[1], [0], [0], [1], [0, 0, 1, 1], [], []>} : vector<8x4xf32>, vector<4x256xf32>, vector<8x256xf32> -> vector<8x256xf32>
    %10 = vector.broadcast %3 : vector<8x1xf32> to vector<8x256xf32>
    %11 = arith.addf %9, %10 : vector<8x256xf32>
    %c0_10 = arith.constant 0 : index
    %c0_11 = arith.constant 0 : index
    %c0_12 = arith.constant 0 : index
    %12 = vector.load %arg7[%c0_10, %c0_11, %c0_12] : memref<1x8x256xf32, #tpu.memory_space<vmem>>, vector<1x8x256xf32>
    %13 = vector.shape_cast %12 : vector<1x8x256xf32> to vector<8x256xf32>
    %14 = vector.shape_cast %11 : vector<8x256xf32> to vector<1x8x256xf32>
    tpu.vector_store %arg7[%c0_10, %c0_11, %c0_12], %14 {strides = array<i32>} : memref<1x8x256xf32, #tpu.memory_space<vmem>>, vector<1x8x256xf32>,
    return
  }
  func.func @transform_0(%arg0: i32, %arg1: i32) -> (i32, i32, i32) {
    %c0_i32 = arith.constant 0 : i32
    %c0_i32_0 = arith.constant 0 : i32
    return %arg1, %c0_i32, %arg0 : i32, i32, i32
  }
  func.func @transform_1(%arg0: i32, %arg1: i32) -> (i32, i32) {
    %c0_i32 = arith.constant 0 : i32
    %c0_i32_0 = arith.constant 0 : i32
    return %c0_i32, %arg0 : i32, i32
  }
  func.func @transform_2(%arg0: i32, %arg1: i32) -> (i32, i32) {
    %c0_i32 = arith.constant 0 : i32
    %c0_i32_0 = arith.constant 0 : i32
    return %c0_i32, %arg0 : i32, i32
  }
  func.func @transform_3(%arg0: i32, %arg1: i32) -> (i32, i32) {
    %c0_i32 = arith.constant 0 : i32
    %c0_i32_0 = arith.constant 0 : i32
    %c0_i32_1 = arith.constant 0 : i32
    return %c0_i32, %c0_i32_0 : i32, i32
  }
  func.func @transform_4(%arg0: i32, %arg1: i32) -> (i32, i32) {
    %c0_i32 = arith.constant 0 : i32
    %c0_i32_0 = arith.constant 0 : i32
    %c0_i32_1 = arith.constant 0 : i32
    return %c0_i32, %c0_i32_0 : i32, i32
  }
  func.func @transform_5(%arg0: i32, %arg1: i32) -> (i32, i32, i32) {
    %c0_i32 = arith.constant 0 : i32
    %c0_i32_0 = arith.constant 0 : i32
    return %arg1, %c0_i32, %arg0 : i32, i32, i32
  }
}

</mosaic_0001>

<llo_original>
// kernel: tpu_custom_call.1
$region0: #{tpu_custom_call.1}
  #allocation0 [shape = 'u32[]', space=smem, size = 0x4, offset = 0x4, fixed_abs, tag = 'smem constant byte address 0x4 - core index']
  #allocation1 [shape = 'u32[144,128]{1,0:T(1,128)}', space=vmem, size = 0x12000, scoped, tag = 'internal scratch']
  %s0 = inlined_call_operand.vmem [shape: f32[2,4,256], index: 0, kind: input, shape index: {}]
  %s1 = inlined_call_operand.vmem [shape: f32[4,256], index: 1, kind: input, shape index: {}]
  %s2 = inlined_call_operand.hbm [shape: f32[4,256], index: 2, kind: input, shape index: {}]
  %s3 = inlined_call_operand.vmem [shape: f32[8,4], index: 3, kind: input, shape index: {}]
  %s4 = inlined_call_operand.vmem [shape: f32[8,1], index: 4, kind: input, shape index: {}]
  %s5 = inlined_call_operand.hbm [shape: f32[2,8,256], index: 5, kind: output, shape index: {}]
  %s6 = sld [smem:[#allocation0]]
  $region57: #{tpu_custom_call.1} parent=0
    _
  %s8 = ssub.s32 1, %s6
  %s9 = scalar_select 0, %s8, %s6
  $region1: #{tpu_custom_call.1} parent=0
    #allocation2 [shape = 'u8[4096]{0}', space=vmem, size = 0x1000, scoped, tag = 'input window, operand 2, single buffered']
    #allocation3 [shape = 's32[2]{0}', space=sflag, size = 0x8, scoped, tag = 'scoped memory for tpu_custom_call.1']
    #allocation4 [shape = 's32[2]{0}', space=sflag, size = 0x8, scoped, tag = 'scoped memory for tpu_custom_call.1']
    #allocation5 [shape = 'u8[16384]{0}', space=vmem, size = 0x4000, scoped, tag = 'output window, operand 0']
    %10 = vsyncpa [#allocation3], 0
    %11 = vsyncpa [#allocation4], 0
    %s12 = scalar_lea.sflag [#allocation4], 1
    %13 = vsyncpa %s12, 0
    loop: start=0, step=1, limit=4
    $region2: #{tpu_custom_call.1} parent=1 // loop_pre_header
      _
    $region3: #{tpu_custom_call.1} parent=1 // loop_header
      %s15 = sphi 0, %s19
      %p16 = scmp.ge.s32.totalorder %s15, 4
      %s22 = sphi 0, %s34
      %s23 = sphi 0, %s30
      %s24 = sphi 0, %s22
      %s25 = sphi 0, %s23
      %s26 = sphi 0, %s24
      %s27 = sphi 0, %s25
      %s39 = sphi 0, %s41
      %s42 = sphi 0, %s39
      %s43 = sphi 0, %s42
      %s59 = sphi 0, %s43
      %s65 = sphi 0, %s67
      %s68 = sphi 0, %s65
      %s69 = sphi 0, %s68
      %s85 = sphi 0, %s69
      %s91 = sphi 0, %s93
      %s94 = sphi 0, %s91
      %s95 = sphi 0, %s94
      %s111 = sphi 0, %s95
      %s115 = sphi 0, %s115
      %s117 = sphi 0, %s115
      %s118 = sphi 0, %s117
      %s132 = sphi 0, %s118
      %s136 = sphi 0, %s136
      %s138 = sphi 0, %s136
      %s139 = sphi 0, %s138
      %s153 = sphi 0, %s139
      %s161 = sphi 0, %s163
      %s164 = sphi 0, %s161
      %s165 = sphi 0, %s164
      %s181 = sphi 0, %s165
    $region4: #{tpu_custom_call.1} parent=1 // loop_header_branch
      %18 = sbr.rel (%p16) target = $region8
    $region5: #{tpu_custom_call.1} parent=1 // loop_body
      %s20 = ssub.s32 %s15, 1
      %s21 = ssub.s32 %s15, 2
      %s28 = sadd.s32 1, %s23
      %p29 = scmp.ge.s32.totalorder %s28, 2
      %s30 = scalar_select %p29, 0, %s28
      %s31 = sadd.s32 1, %s22
      %s32 = scalar_select %p29, %s31, %s22
      %p33 = scmp.ge.s32.totalorder %s32, 1
      %s34 = scalar_select %p33, 0, %s32
      %s35 = ssub.s32 %s23, %s30
      %s36 = ssub.s32 %s22, %s34
      %s37 = sor.u32 %s35, %s36
      %p38 = scmp.eq.s32.totalorder %s37, 0
      %s40 = sadd.s32 %s39, 1
      %s41 = scalar_select %p38, %s39, %s40
      %p44 = pneg %p38
      %p45 = scmp.eq.s32.totalorder %s15, 1
      %p46 = por %p44, %p45
      %p47 = scmp.ne.s32.totalorder %s39, %s42
      %p48 = scmp.eq.s32.totalorder %s15, 0
      %p49 = por %p47, %p48
      %p50 = scmp.ne.s32.totalorder %s39, %s42
      %p51 = scmp.eq.s32.totalorder %s20, 1
      %p52 = por %p50, %p51
      %p53 = scmp.ne.s32.totalorder %s42, %s43
      %p54 = scmp.eq.s32.totalorder %s20, 0
      %p55 = por %p53, %p54
      %p56 = scmp.ne.s32.totalorder %s42, %s43
      %p57 = scmp.eq.s32.totalorder %s21, 1
      %p58 = por %p56, %p57
      %p60 = scmp.ne.s32.totalorder %s43, %s59
      %p61 = scmp.eq.s32.totalorder %s21, 0
      %p62 = por %p60, %p61
      %s63 = ssub.s32 %s22, %s34
      %p64 = scmp.eq.s32.totalorder %s63, 0
      %s66 = sadd.s32 %s65, 1
      %s67 = scalar_select %p64, %s65, %s66
      %p70 = pneg %p64
      %p71 = scmp.eq.s32.totalorder %s15, 1
      %p72 = por %p70, %p71
      %p73 = scmp.ne.s32.totalorder %s65, %s68
      %p74 = scmp.eq.s32.totalorder %s15, 0
      %p75 = por %p73, %p74
      %p76 = scmp.ne.s32.totalorder %s65, %s68
      %p77 = scmp.eq.s32.totalorder %s20, 1
      %p78 = por %p76, %p77
      %p79 = scmp.ne.s32.totalorder %s68, %s69
      %p80 = scmp.eq.s32.totalorder %s20, 0
      %p81 = por %p79, %p80
      %p82 = scmp.ne.s32.totalorder %s68, %s69
      %p83 = scmp.eq.s32.totalorder %s21, 1
      %p84 = por %p82, %p83
      %p86 = scmp.ne.s32.totalorder %s69, %s85
      %p87 = scmp.eq.s32.totalorder %s21, 0
      %p88 = por %p86, %p87
      %s89 = ssub.s32 %s22, %s34
      %p90 = scmp.eq.s32.totalorder %s89, 0
      %s92 = sadd.s32 %s91, 1
      %s93 = scalar_select %p90, %s91, %s92
      %p96 = pneg %p90
      %p97 = scmp.eq.s32.totalorder %s15, 1
      %p98 = por %p96, %p97
      %p99 = scmp.ne.s32.totalorder %s91, %s94
      %p100 = scmp.eq.s32.totalorder %s15, 0
      %p101 = por %p99, %p100
      %p102 = scmp.ne.s32.totalorder %s91, %s94
      %p103 = scmp.eq.s32.totalorder %s20, 1
      %p104 = por %p102, %p103
      %p105 = scmp.ne.s32.totalorder %s94, %s95
      %p106 = scmp.eq.s32.totalorder %s20, 0
      %p107 = por %p105, %p106
      %p108 = scmp.ne.s32.totalorder %s94, %s95
      %p109 = scmp.eq.s32.totalorder %s21, 1
      %p110 = por %p108, %p109
      %p112 = scmp.ne.s32.totalorder %s95, %s111
      %p113 = scmp.eq.s32.totalorder %s21, 0
      %p114 = por %p112, %p113
      %s116 = sadd.s32 %s115, 1
      %p119 = scmp.eq.s32.totalorder %s15, 1
      %p120 = scmp.ne.s32.totalorder %s115, %s117
      %p121 = scmp.eq.s32.totalorder %s15, 0
      %p122 = por %p120, %p121
      %p123 = scmp.ne.s32.totalorder %s115, %s117
      %p124 = scmp.eq.s32.totalorder %s20, 1
      %p125 = por %p123, %p124
      %p126 = scmp.ne.s32.totalorder %s117, %s118
      %p127 = scmp.eq.s32.totalorder %s20, 0
      %p128 = por %p126, %p127
      %p129 = scmp.ne.s32.totalorder %s117, %s118
      %p130 = scmp.eq.s32.totalorder %s21, 1
      %p131 = por %p129, %p130
      %p133 = scmp.ne.s32.totalorder %s118, %s132
      %p134 = scmp.eq.s32.totalorder %s21, 0
      %p135 = por %p133, %p134
      %s137 = sadd.s32 %s136, 1
      %p140 = scmp.eq.s32.totalorder %s15, 1
      %p141 = scmp.ne.s32.totalorder %s136, %s138
      %p142 = scmp.eq.s32.totalorder %s15, 0
      %p143 = por %p141, %p142
      %p144 = scmp.ne.s32.totalorder %s136, %s138
      %p145 = scmp.eq.s32.totalorder %s20, 1
      %p146 = por %p144, %p145
      %p147 = scmp.ne.s32.totalorder %s138, %s139
      %p148 = scmp.eq.s32.totalorder %s20, 0
      %p149 = por %p147, %p148
      %p150 = scmp.ne.s32.totalorder %s138, %s139
      %p151 = scmp.eq.s32.totalorder %s21, 1
      %p152 = por %p150, %p151
      %p154 = scmp.ne.s32.totalorder %s139, %s153
      %p155 = scmp.eq.s32.totalorder %s21, 0
      %p156 = por %p154, %p155
      %s157 = ssub.s32 %s23, %s30
      %s158 = ssub.s32 %s22, %s34
      %s159 = sor.u32 %s157, %s158
      %p160 = scmp.eq.s32.totalorder %s159, 0
      %s162 = sadd.s32 %s161, 1
      %s163 = scalar_select %p160, %s161, %s162
      %p166 = pneg %p160
      %p167 = scmp.eq.s32.totalorder %s15, 1
      %p168 = por %p166, %p167
      %p169 = scmp.ne.s32.totalorder %s161, %s164
      %p170 = scmp.eq.s32.totalorder %s15, 0
      %p171 = por %p169, %p170
      %p172 = scmp.ne.s32.totalorder %s161, %s164
      %p173 = scmp.eq.s32.totalorder %s20, 1
      %p174 = por %p172, %p173
      %p175 = scmp.ne.s32.totalorder %s164, %s165
      %p176 = scmp.eq.s32.totalorder %s20, 0
      %p177 = por %p175, %p176
      %p178 = scmp.ne.s32.totalorder %s164, %s165
      %p179 = scmp.eq.s32.totalorder %s21, 1
      %p180 = por %p178, %p179
      %p182 = scmp.ne.s32.totalorder %s165, %s181
      %p183 = scmp.eq.s32.totalorder %s21, 0
      %p184 = por %p182, %p183
      %p185 = scmp.le.s32.totalorder 1, %s15
      %p186 = scmp.lt.s32.totalorder %s15, 3
      %p187 = pnand %p185, %p186
      %p188 = pneg %p187
      // Predicated region
      $region9: #{tpu_custom_call.1} parent=5 // pred_check
        _
      $region10: #{tpu_custom_call.1} parent=5 // pred_check_branch
        %190 = sbr.rel (%p187) target = $region12
      $region11: #{tpu_custom_call.1} parent=5 // pred_region
        %s191 = ssub.s32 %s15, 1
        // Predicated region
        $region13: #{tpu_custom_call.1} parent=11 // pred_check
          %p192 = pneg %p81
        $region14: #{tpu_custom_call.1} parent=11 // pred_check_branch
          %194 = sbr.rel (%p192) target = $region16
        $region15: #{tpu_custom_call.1} parent=11 // pred_region
          %s195 = smul.u32 2, %s24
          %p196 = scmp.lt.s32.totalorder %s195, 1
          %s197 = scalar_select %p196, %s195, 1
          %s198 = smul.addr %s197, 4
          %s199 = scalar_lea.vmem %s1, %s198
          %s200 = smul.u32 2, %s24
        $region16: #{tpu_custom_call.1} parent=11 // pred_fallthru
          _
        // Predicated region
        $region17: #{tpu_custom_call.1} parent=11 // pred_check
          %p201 = pneg %p107
        $region18: #{tpu_custom_call.1} parent=11 // pred_check_branch
          %203 = sbr.rel (%p201) target = $region20
        $region19: #{tpu_custom_call.1} parent=11 // pred_region
          %s204 = smul.u32 2, %s24
          %s206 = ssub.s32 128, 128
          %207 = vsyncadd [#allocation3], %s206
          %s208 = smul.addr %s204, 64
          %s209 = scalar_lea.hbm %s2, %s208
          %s211 = sshll.u32 [#allocation2], 4
          %s212 = int_to_ptr.vmem [resolvable:$true] %s211
          %214 = dma.hbm_to_vmem [thread:$0]  %s209, 128, %s212, [#allocation3]
        $region20: #{tpu_custom_call.1} parent=11 // pred_fallthru
          _
        // Predicated region
        $region21: #{tpu_custom_call.1} parent=11 // pred_check
          %p215 = pneg %p128
        $region22: #{tpu_custom_call.1} parent=11 // pred_check_branch
          %217 = sbr.rel (%p215) target = $region24
        $region23: #{tpu_custom_call.1} parent=11 // pred_region
          _
        $region24: #{tpu_custom_call.1} parent=11 // pred_fallthru
          _
        // Predicated region
        $region25: #{tpu_custom_call.1} parent=11 // pred_check
          %p218 = pneg %p149
        $region26: #{tpu_custom_call.1} parent=11 // pred_check_branch
          %220 = sbr.rel (%p218) target = $region28
        $region27: #{tpu_custom_call.1} parent=11 // pred_region
          _
        $region28: #{tpu_custom_call.1} parent=11 // pred_fallthru
          _
      $region12: #{tpu_custom_call.1} parent=5 // pred_fallthru
        _
      %p221 = scmp.lt.s32.totalorder %s15, 2
      // Predicated region
      $region29: #{tpu_custom_call.1} parent=5 // pred_check
        %p222 = pneg %p221
      $region30: #{tpu_custom_call.1} parent=5 // pred_check_branch
        %224 = sbr.rel (%p222) target = $region32
      $region31: #{tpu_custom_call.1} parent=5 // pred_region
        // Predicated region
        $region33: #{tpu_custom_call.1} parent=31 // pred_check
          %p225 = pneg %p49
        $region34: #{tpu_custom_call.1} parent=31 // pred_check_branch
          %227 = sbr.rel (%p225) target = $region36
        $region35: #{tpu_custom_call.1} parent=31 // pred_region
          %s228 = smul.u32 2, %s22
          %p229 = scmp.lt.s32.totalorder %s23, 1
          %s230 = scalar_select %p229, %s23, 1
          %p231 = scmp.lt.s32.totalorder %s228, 1
          %s232 = scalar_select %p231, %s228, 1
          %s233 = smul.addr %s230, 2
          %s234 = sadd.s32 %s232, %s233
          %s235 = smul.addr %s234, 4
          %s236 = scalar_lea.vmem %s0, %s235
          %s237 = smul.u32 2, %s22
        $region36: #{tpu_custom_call.1} parent=31 // pred_fallthru
          _
      $region32: #{tpu_custom_call.1} parent=5 // pred_fallthru
        _
      %p238 = scmp.le.s32.totalorder 1, %s15
      %p239 = scmp.lt.s32.totalorder %s15, 3
      %p240 = pnand %p238, %p239
      %p241 = pneg %p240
      // Predicated region
      $region37: #{tpu_custom_call.1} parent=5 // pred_check
        _
      $region38: #{tpu_custom_call.1} parent=5 // pred_check_branch
        %243 = sbr.rel (%p240) target = $region40
      $region39: #{tpu_custom_call.1} parent=5 // pred_region
        %s244 = ssub.s32 %s15, 1
        // Predicated region
        $region41: #{tpu_custom_call.1} parent=39 // pred_check
          %p245 = pneg %p107
        $region42: #{tpu_custom_call.1} parent=39 // pred_check_branch
          %247 = sbr.rel (%p245) target = $region44
        $region43: #{tpu_custom_call.1} parent=39 // pred_region
          %248 = dma.done [#allocation3], 128
        $region44: #{tpu_custom_call.1} parent=39 // pred_fallthru
          _
        %s249 = smul.u32 2, %s24
        %p250 = scmp.lt.s32.totalorder %s25, 1
        %s251 = scalar_select %p250, %s25, 1
        %p252 = scmp.lt.s32.totalorder %s249, 1
        %s253 = scalar_select %p252, %s249, 1
        %s254 = smul.addr %s251, 2
        %s255 = sadd.s32 %s253, %s254
        %s256 = smul.addr %s255, 4
        %s257 = scalar_lea.vmem %s0, %s256
        %p258 = pneg %p55
        %p259 = pneg %p52
        %s260 = smul.u32 2, %s24
        %p261 = scmp.lt.s32.totalorder %s260, 1
        %s262 = scalar_select %p261, %s260, 1
        %s263 = smul.addr %s262, 4
        %s264 = scalar_lea.vmem %s1, %s263
        %p265 = pneg %p81
        %p266 = pneg %p78
        %p267 = pneg %p107
        %p268 = pneg %p104
        %p269 = pneg %p128
        %p270 = pneg %p125
        %p271 = pneg %p149
        %p272 = pneg %p146
        %p273 = pneg %p177
        %p274 = pneg %p174
        %s275 = sand.u32 %s164, 1
        %s276 = scalar_lea.sflag [#allocation4], %s275
        %s277 = sand.u32 %s164, 1
        %s278 = smul.addr %s277, 16
        %s279 = scalar_lea.vmem [#allocation5], %s278
        %s280 = smul.u32 2, %s24
        %p281 = scmp.lt.s32.totalorder %s25, 1
        %s282 = scalar_select %p281, %s25, 1
        %p283 = scmp.lt.s32.totalorder %s280, 1
        %s284 = scalar_select %p283, %s280, 1
        %s285 = smul.addr %s282, 2
        %s286 = sadd.s32 %s284, %s285
        %s287 = smul.addr %s286, 4
        %s288 = scalar_lea.vmem %s0, %s287
        %s289 = smul.u32 2, %s24
        %s290 = smul.u32 2, %s24
        %p291 = scmp.lt.s32.totalorder %s290, 1
        %s292 = scalar_select %p291, %s290, 1
        %s293 = smul.addr %s292, 4
        %s294 = scalar_lea.vmem %s1, %s293
        %s295 = smul.u32 2, %s24
        %s296 = smul.u32 2, %s24
        %s297 = smul.u32 2, %s24
        %v298 = vld [vmem:[%s294] sm:$0xff]
        %v299 = vld [vmem:[#allocation2] sm:$0xff]
        %v300 = vld [vmem:[%s3] sm:$0xff]
        %v301 = vld [vmem:[%s4] sm:$0xff]
        %v302 = vld [vmem:[%s288] sm:$0xff]
        %v303 = vadd.f32 %v302, %v299
        %v304 = vand.u32 2147483647, %v303
        %vm305 = vcmp.le.f32.partialorder %v304, 0.7853982
        %vm306 = vcmp.lt.s32.totalorder %v303, 0
        %v307 = vand.u32 %v303, 2139095040
        %v308 = vshrl.u32 %v307, 23
        %v309 = vsub.s32 %v308, 127
        %v310 = vand.u32 2147483647, %v303
        %v311 = vand.u32 %v310, 8388607
        %v312 = vor.u32 %v311, 8388608
        %v313 = vsub.s32 0, %v312
        %v314 = vadd.s32 %v309, 1
        %vm315 = vcmp.gt.s32.totalorder %v314, 0
        %v316 = vsel %vm315, %v314, 0
        %v317 = vshrl.u32 %v316, 5
        %v318 = vand.u32 %v316, 31
        %v319 = vsub.s32 32, %v318
        %v320 = vshrl.u32 683565275, %v319
        %v321 = vshll.u32 683565275, %v318
        %v322 = vshrl.u32 2475754826, %v319
        %v323 = vor.u32 %v321, %v322
        %v324 = vshll.u32 2475754826, %v318
        %v325 = vshrl.u32 2131351028, %v319
        %v326 = vor.u32 %v324, %v325
        %v327 = vshll.u32 2131351028, %v318
        %v328 = vshrl.u32 2102212464, %v319
        %v329 = vor.u32 %v327, %v328
        %v330 = vshll.u32 2102212464, %v318
        %v331 = vshrl.u32 920167782, %v319
        %v332 = vor.u32 %v330, %v331
        %v333 = vshll.u32 920167782, %v318
        %v334 = vshrl.u32 1326507024, %v319
        %v335 = vor.u32 %v333, %v334
        %vm336 = vcmp.lt.s32.totalorder %v317, 1
        %vm337 = vcmp.lt.s32.totalorder %v317, 2
        %vm338 = vcmp.lt.s32.totalorder %v317, 3
        %vm339 = vcmp.lt.s32.totalorder %v317, 4
        %v340 = vsel %vm336, %v320, %v323
        %v341 = vsel %vm339, %v329, 2102212464
        %v342 = vsel %vm338, %v326, %v341
        %v343 = vsel %vm337, %v340, %v342
        %v344 = vsel %vm336, %v323, %v326
        %v345 = vsel %vm339, %v332, 920167782
        %v346 = vsel %vm338, %v329, %v345
        %v347 = vsel %vm337, %v344, %v346
        %v348 = vsel %vm336, %v326, %v329
        %v349 = vsel %vm339, %v335, 1326507024
        %v350 = vsel %vm338, %v332, %v349
        %v351 = vsel %vm337, %v348, %v350
        %v352 = vshll.u32 %v312, 8
        %v353 = vmul.u32.u64.compose %v352, %v351
        %v354 = vextract.low.u32 %v353
        %v355 = vextract.high.u32 %v353
        %v356 = vmul.u32.u64.compose %v352, %v347
        %v357 = vextract.low.u32 %v356
        %v358 = vextract.high.u32 %v356
        %v359 = vmul.u32 %v352, %v343
        %v360 = vadd.s32 %v355, %v357
        %vm361 = vc.u32 %v355, %v357
        %v362 = vadd.s32 %v358, 1
        %v363 = vsel %vm361, %v362, %v358
        %v364 = vadd.s32 %v359, %v363
        %v365 = vadd.s32 %v364, 536870912
        %v366 = vshrl.u32 %v365, 30
        %v367 = vshll.u32 %v366, 30
        %v368 = vsub.s32 %v364, %v367
        %vm369 = vcmp.lt.s32.totalorder %v368, 0
        %v370 = vsub.s32 0, %v368
        %v371 = vsel %vm369, %v370, %v368
        %v372 = vclz %v371
        %v373 = vsub.s32 %v372, 2
        %vm374 = vcmp.gt.s32.totalorder 0, %v373
        %v375 = vsel %vm374, 0, %v373
        %v376 = vsub.s32 32, %v375
        %v377 = vshll.u32 %v368, %v375
        %v378 = vshrl.u32 %v360, %v376
        %v379 = vor.u32 %v377, %v378
        %v380 = vsub.s32 4294967266, %v375
        %v381 = vadd.s32 %v380, 127
        %v382 = vshll.u32 %v381, 23
        %v383 = vor.u32 4788187, %v382
        %v384 = vand.u32 2147483647, %v383
        %v386 = vcvt.s32.f32 %v379
        %v387 = vmul.f32 %v386, %v384
        %v388 = vxor.u32 %v387, 2147483648
        %v389 = vsel %vm306, %v388, %v387
        %v390 = vsub.s32 4, %v366
        %v391 = vsel %vm306, %v390, %v366
        %v392 = vsel %vm305, %v303, %v389
        %v393 = vsel %vm305, 0, %v391
        %v394 = vcosq.f32.pop %v392
        %v395 = vsinq.f32.pop %v392
        %vm396 = vweird.f32 %v303
        %v397 = vand.u32 %v393, 3
        %vm398 = vcmp.lt.s32.totalorder %v397, 2
        %vm399 = vcmp.eq.s32.totalorder %v397, 0
        %v400 = vxor.u32 %v395, 2147483648
        %v401 = vsel %vm399, %v394, %v400
        %vm402 = vcmp.eq.s32.totalorder %v397, 2
        %v403 = vxor.u32 %v394, 2147483648
        %v404 = vsel %vm402, %v403, %v395
        %v405 = vsel %vm398, %v401, %v404
        %v406 = vsel %vm396, nan, %v405
        %v407 = vmul.f32 %v298, %v406
        %409 = vset.pattern.permute.xlu0 0
        %410 = vperm.xlu0 %409, %v301
        %v411 = vpop.permute.xlu0 %410
        %v414 = vcombine.high %v407, %v407
        %vm415 = vcmask 31744
        %v417 = vsel %vm415, %v300, 0
        %vm419 = vcmask 1043456
        %v420 = vsel %vm419, %v407, 0
        %v422 = vsel %vm419, %v414, 0
        %424 = vmatprep.subr.mxu0 %v422
        %425 = vmatpush1.msra.mxu0 %v420
        %426 = vmatprep.subr.mxu0 0.0
        %427 = vmatpush1.msra.mxu0 0.0
        %428 = vmatprep.subr.mxu0 0.0
        %429 = vmatpush1.msra.mxu0 0.0
        %430 = vmatprep.subr.mxu0 0.0
        %431 = vmatpush1.msra.mxu0 0.0
        %432 = vmatprep.subr.mxu0 0.0
        %433 = vmatpush1.msra.mxu0 0.0
        %434 = vmatprep.subr.mxu0 0.0
        %435 = vmatpush1.msra.mxu0 0.0
        %436 = vmatprep.subr.mxu0 0.0
        %437 = vmatpush1.msra.mxu0 0.0
        %438 = vmatprep.subr.mxu0 0.0
        %439 = vmatpush1.msra.mxu0 0.0
        %440 = vmatprep.subr.mxu0 0.0
        %441 = vmatpush1.msra.mxu0 0.0
        %442 = vmatprep.subr.mxu0 0.0
        %443 = vmatpush1.msra.mxu0 0.0
        %444 = vmatprep.subr.mxu0 0.0
        %445 = vmatpush1.msra.mxu0 0.0
        %446 = vmatprep.subr.mxu0 0.0
        %447 = vmatpush1.msra.mxu0 0.0
        %448 = vmatprep.subr.mxu0 0.0
        %449 = vmatpush1.msra.mxu0 0.0
        %450 = vmatprep.subr.mxu0 0.0
        %451 = vmatpush1.msra.mxu0 0.0
        %452 = vmatprep.subr.mxu0 0.0
        %453 = vmatpush1.msra.mxu0 0.0
        %454 = vmatprep.subr.mxu0 0.0
        %455 = vmatpush1.msra.mxu0 0.0
        %456 = vmatprep.subr.mxu0 0.0
        %457 = vmatpush1.msra.mxu0 0.0
        %458 = vmatprep.subr.mxu0 0.0
        %459 = vmatpush1.msra.mxu0 0.0
        %460 = vmatprep.subr.mxu0 0.0
        %461 = vmatpush1.msra.mxu0 0.0
        %462 = vmatprep.subr.mxu0 0.0
        %463 = vmatpush1.msra.mxu0 0.0
        %464 = vmatprep.subr.mxu0 0.0
        %465 = vmatpush1.msra.mxu0 0.0
        %466 = vmatprep.subr.mxu0 0.0
        %467 = vmatpush1.msra.mxu0 0.0
        %468 = vmatprep.subr.mxu0 0.0
        %469 = vmatpush1.msra.mxu0 0.0
        %470 = vmatprep.subr.mxu0 0.0
        %471 = vmatpush1.msra.mxu0 0.0
        %472 = vmatprep.subr.mxu0 0.0
        %473 = vmatpush1.msra.mxu0 0.0
        %474 = vmatprep.subr.mxu0 0.0
        %475 = vmatpush1.msra.mxu0 0.0
        %476 = vmatprep.subr.mxu0 0.0
        %477 = vmatpush1.msra.mxu0 0.0
        %478 = vmatprep.subr.mxu0 0.0
        %479 = vmatpush1.msra.mxu0 0.0
        %480 = vmatprep.subr.mxu0 0.0
        %481 = vmatpush1.msra.mxu0 0.0
        %482 = vmatprep.subr.mxu0 0.0
        %483 = vmatpush1.msra.mxu0 0.0
        %484 = vmatprep.subr.mxu0 0.0
        %485 = vmatpush1.msra.mxu0 0.0
        %486 = vmatprep.subr.mxu0 0.0
        %487 = vmatpush1.msra.mxu0 0.0
        %488 = vmatprep.mubr.f32.mxu0 0.0
        %489 = vmatmul.mubr.f32.gmra.mrb[0].mxu0 %v417
        %v490 = vpop.f32.mrb[0].mxu0
        %v491 = vadd.f32 %v411, %v490
        %v492 = vpop.f32.mrb[0].mxu0
        %v493 = vadd.f32 %v411, %v492
        %494 = vdwg.mxu0
        %495 = vst [vmem:[%s279] sm:$0xff] %v491
        %496 = vst [vmem:[%s279 + $0x8] sm:$0xff] %v493
        %s497 = sand.u32 %s164, 1
        %s498 = scalar_lea.sflag [#allocation4], %s497
        %s499 = sand.u32 %s164, 1
        %s500 = smul.addr %s499, 16
        %s501 = scalar_lea.vmem [#allocation5], %s500
        // Predicated region
        $region45: #{tpu_custom_call.1} parent=39 // pred_check
          %p502 = pneg %p174
        $region46: #{tpu_custom_call.1} parent=39 // pred_check_branch
          %504 = sbr.rel (%p502) target = $region48
        $region47: #{tpu_custom_call.1} parent=39 // pred_region
          %s505 = smul.u32 2, %s24
          %s507 = ssub.s32 256, 256
          %508 = vsyncadd %s498, %s507
          %s509 = smul.addr %s25, 2
          %s510 = sadd.s32 %s505, %s509
          %s511 = smul.addr %s510, 128
          %s512 = scalar_lea.hbm %s5, %s511
          %s514 = sshll.u32 %s501, 4
          %s515 = int_to_ptr.vmem [resolvable:$true] %s514
          %517 = dma.vmem_to_hbm [thread:$0]  %s515, 256, %s512, %s498
        $region48: #{tpu_custom_call.1} parent=39 // pred_fallthru
          _
      $region40: #{tpu_custom_call.1} parent=5 // pred_fallthru
        _
      %p518 = scmp.le.s32.totalorder 2, %s15
      // Predicated region
      $region49: #{tpu_custom_call.1} parent=5 // pred_check
        %p519 = pneg %p518
      $region50: #{tpu_custom_call.1} parent=5 // pred_check_branch
        %521 = sbr.rel (%p519) target = $region52
      $region51: #{tpu_custom_call.1} parent=5 // pred_region
        %s522 = ssub.s32 %s15, 2
        // Predicated region
        $region53: #{tpu_custom_call.1} parent=51 // pred_check
          %p523 = pneg %p180
        $region54: #{tpu_custom_call.1} parent=51 // pred_check_branch
          %525 = sbr.rel (%p523) target = $region56
        $region55: #{tpu_custom_call.1} parent=51 // pred_region
          %s526 = sand.u32 %s165, 1
          %s527 = scalar_lea.sflag [#allocation4], %s526
          %s528 = sand.u32 %s165, 1
          %s529 = smul.addr %s528, 16
          %s530 = scalar_lea.vmem [#allocation5], %s529
          %531 = dma.done %s527, 256
        $region56: #{tpu_custom_call.1} parent=51 // pred_fallthru
          _
      $region52: #{tpu_custom_call.1} parent=5 // pred_fallthru
        _
    $region6: #{tpu_custom_call.1} parent=1 // loop_footer
      %s19 = sadd.s32 1, %s15
    $region7: #{tpu_custom_call.1} parent=1 // loop_footer_branch
      %14 = sbr.rel target = $region3
    $region8: #{tpu_custom_call.1} parent=1 // loop_exit
      _
    %532 = vsyncpa [#allocation3], 1
    %s533 = scalar_lea.sflag [#allocation3], 1
    %534 = vsyncpa %s533, 1
    %535 = vsyncpa [#allocation4], 1
    %s536 = scalar_lea.sflag [#allocation4], 1
    %537 = vsyncpa %s536, 1

</llo_original>
